<compile_context>
chip_gen: v7x
topology: tpu7x:2x2x1
jax: 0.10.0
libtpu: 0.0.40
codegen_flags: <defaults>
</compile_context>

<pallas_src>
import jax
import jax.numpy as jnp
from jax.experimental import pallas as pl
from jax.experimental.pallas import tpu as pltpu

# ----------------------------- configuration --------------------------------
KH, KW = 3, 3          # feature-extractor conv kernel
C_FEAT = 8             # feature-extractor output channels
NUM_SHARDS = 2         # leading 'parallel' grid axis (v7x megacore split)


# ------------------------------ Pallas kernel --------------------------------
def _feature_sq_diff_kernel(pf_ref, pt_ref, w_ref, b_ref, out_ref):
    """Fused feature extraction + per-lane squared-diff accumulation.

    pf_ref, pt_ref : [K, TM]      bf16 im2col patches (K = 9*C on sublanes,
                                  patch/pixel index on lanes)
    w_ref          : [C_FEAT, K]  bf16 conv weight as matmul LHS
    b_ref          : [C_FEAT, 1]  f32 conv bias
    out_ref        : [C_FEAT, TM] f32 per-shard, per-lane partial sums
                                  (resident across the 'arbitrary' axis)
    """
    t = pl.program_id(1)

    @pl.when(t == 0)
    def _():
        out_ref[...] = jnp.zeros_like(out_ref)

    w = w_ref[...]
    b = b_ref[...]

    f_fake = jnp.maximum(
        jnp.dot(w, pf_ref[...], preferred_element_type=jnp.float32) + b, 0.0)
    f_tgt = jnp.maximum(
        jnp.dot(w, pt_ref[...], preferred_element_type=jnp.float32) + b, 0.0)

    d = f_fake - f_tgt
    out_ref[...] += d * d          # pure VPU add into the resident f32 block


# --------------------------------- glue --------------------------------------
def _im2col_km(x_nchw_bf16):
    """[B, C, H, W] bf16 -> [KH*KW*C, B*H*W] bf16 'same'-padded 3x3 patches.

    K ordering is (kernel-offset, channel); M ordering is (b, h, w); M sits on
    the minor (lane) axis so the streamed tiles are lane-dense.
    """
    B, C, H, W = x_nchw_bf16.shape
    xp = jnp.pad(x_nchw_bf16, ((0, 0), (0, 0), (1, 1), (1, 1)))
    taps = [
        jnp.transpose(xp[:, :, di:di + H, dj:dj + W], (1, 0, 2, 3)).reshape(C, B * H * W)
        for di in range(KH) for dj in range(KW)
    ]
    return jnp.concatenate(taps, axis=0)           # [9*C, M]


def feature_mse_loss(fake, target, conv_w, conv_b, *, tile_m=8192):
    """fake, target: [B, C, H, W]. conv_w: [C_FEAT, C, KH, KW]. conv_b: [C_FEAT]."""
    B, C, H, W = fake.shape
    M = B * H * W
    K = KH * KW * C
    n_elems = B * C_FEAT * H * W                   # real feature elements

    # bf16 *before* im2col (review item 5); patch layout [K, M] (review item 2).
    pf = _im2col_km(fake.astype(jnp.bfloat16))
    pt = _im2col_km(target.astype(jnp.bfloat16))

    # Tile / shard bookkeeping.  tm is a multiple of 128 (lane width); padded
    # patch columns are all-zero, so fake/target features there are both
    # relu(bias) and contribute exactly 0 to the squared-diff sum.
    rows_per_shard = (M + NUM_SHARDS - 1) // NUM_SHARDS
    tm = max(128, min(tile_m, rows_per_shard))
    tm = ((tm + 127) // 128) * 128
    tiles_per_shard = (rows_per_shard + tm - 1) // tm
    m_pad = NUM_SHARDS * tiles_per_shard * tm
    if m_pad != M:
        pf = jnp.pad(pf, ((0, 0), (0, m_pad - M)))
        pt = jnp.pad(pt, ((0, 0), (0, m_pad - M)))

    # Conv weight as matmul LHS [C_FEAT, K]; K ordering matches the patches.
    w2d = jnp.transpose(conv_w.astype(jnp.float32), (0, 2, 3, 1)).reshape(C_FEAT, K)
    w2d = w2d.astype(jnp.bfloat16)
    b2d = conv_b.astype(jnp.float32).reshape(C_FEAT, 1)

    patch_idx = lambda s, t: (0, s * tiles_per_shard + t)

    partial = pl.pallas_call(
        _feature_sq_diff_kernel,
        out_shape=jax.ShapeDtypeStruct((NUM_SHARDS * C_FEAT, tm), jnp.float32),
        grid=(NUM_SHARDS, tiles_per_shard),
        in_specs=[
            pl.BlockSpec((K, tm), patch_idx),                 # fake patches (streamed)
            pl.BlockSpec((K, tm), patch_idx),                 # target patches (streamed)
            pl.BlockSpec((C_FEAT, K), lambda s, t: (0, 0)),   # weight (resident)
            pl.BlockSpec((C_FEAT, 1), lambda s, t: (0, 0)),   # bias   (resident)
        ],
        out_specs=pl.BlockSpec((C_FEAT, tm), lambda s, t: (s, 0)),
        compiler_params=pltpu.CompilerParams(
            dimension_semantics=("parallel", "arbitrary"),
            vmem_limit_bytes=32 * 1024 * 1024),
    )(pf, pt, w2d, b2d)

    # Single cross-lane reduction, done once in XLA (review item 4).
    return jnp.sum(partial) / jnp.float32(n_elems)


# ------------------------------ reference ------------------------------------
def _reference_loss(fake, target, conv_w, conv_b):
    def feat(x):
        y = jax.lax.conv_general_dilated(
            x.astype(jnp.float32), conv_w.astype(jnp.float32),
            window_strides=(1, 1), padding="SAME",
            dimension_numbers=("NCHW", "OIHW", "NCHW"))
        y = y + conv_b[None, :, None, None]
        return jnp.maximum(y, 0.0)
    d = feat(fake) - feat(target)
    return jnp.mean(d * d)


# --------------------------------- main ---------------------------------------
if __name__ == "__main__":
    key = jax.random.PRNGKey(0)
    k_fake, k_tgt, k_w, k_b = jax.random.split(key, 4)

    B, C, H, W = 2, 4, 16, 16
    fake = jax.random.normal(k_fake, (B, C, H, W), dtype=jnp.float32)
    target = jax.random.normal(k_tgt, (B, C, H, W), dtype=jnp.float32)

    # Deterministic synthetic feature-extractor parameters (Conv2d 4->8, 3x3).
    conv_w = 0.1 * jax.random.normal(k_w, (C_FEAT, C, KH, KW), dtype=jnp.float32)
    conv_b = 0.01 * jax.random.normal(k_b, (C_FEAT,), dtype=jnp.float32)

    ref = jax.block_until_ready(_reference_loss(fake, target, conv_w, conv_b))

    # Default (large-tile) configuration: one tile per shard at this small size.
    loss = jax.block_until_ready(feature_mse_loss(fake, target, conv_w, conv_b))
    assert jnp.allclose(loss, ref, rtol=3e-2, atol=1e-5), (loss, ref)

    # Small tile to exercise the multi-step reduction/accumulator path.
    loss_t = jax.block_until_ready(
        feature_mse_loss(fake, target, conv_w, conv_b, tile_m=128))
    assert jnp.allclose(loss_t, ref, rtol=3e-2, atol=1e-5), (loss_t, ref)

    print("KERNEL_OK")
</pallas_src>

<mosaic_0001>
module attributes {stable_mosaic.version = 11 : i64} {
  func.func @_feature_sq_diff_kernel(%arg0: i32, %arg1: i32, %arg2: memref<36x256xbf16, #tpu.memory_space<vmem>>, %arg3: memref<36x256xbf16, #tpu.memory_space<vmem>>, %arg4: memref<8x36xbf16, #tpu.memory_space<vmem>>, %arg5: memref<8x1xf32, #tpu.memory_space<vmem>>, %arg6: memref<8x256xf32, #tpu.memory_space<vmem>>) attributes {dimension_semantics = [#tpu.dimension_semantics<parallel>, #tpu.dimension_semantics<arbitrary>], iteration_bounds = array<i64: 2, 1>, scalar_prefetch = 0 : i64, scratch_operands = 0 : i64, tpu.core_type = #tpu.core_type<tc>, window_params = [{transform_indices = @transform_0, window_bounds = array<i64: 36, 256>}, {transform_indices = @transform_1, window_bounds = array<i64: 36, 256>}, {pipeline_mode = #tpu.pipeline_mode<synchronous>, transform_indices = @transform_2, window_bounds = array<i64: 8, 36>}, {pipeline_mode = #tpu.pipeline_mode<synchronous>, transform_indices = @transform_3, window_bounds = array<i64: 8, 1>}, {transform_indices = @transform_4, window_bounds = array<i64: 8, 256>}]} {
    %c0_i32 = arith.constant 0 : i32
    %0 = arith.cmpi eq, %arg1, %c0_i32 : i32
    %1 = arith.extui %0 : i1 to i32
    %c0_i32_0 = arith.constant 0 : i32
    %2 = arith.cmpi ne, %1, %c0_i32_0 : i32
    scf.if %2 {
      %cst_15 = arith.constant 0.000000e+00 : f32
      %22 = vector.broadcast %cst_15 : f32 to vector<8x256xf32>
      %c0_16 = arith.constant 0 : index
      %c0_17 = arith.constant 0 : index
      %23 = vector.load %arg6[%c0_16, %c0_17] : memref<8x256xf32, #tpu.memory_space<vmem>>, vector<8x256xf32>
      tpu.vector_store %arg6[%c0_16, %c0_17], %22 {strides = array<i32>} : memref<8x256xf32, #tpu.memory_space<vmem>>, vector<8x256xf32>,
    } else {
    }
    %c0 = arith.constant 0 : index
    %c0_1 = arith.constant 0 : index
    %3 = vector.load %arg4[%c0, %c0_1] : memref<8x36xbf16, #tpu.memory_space<vmem>>, vector<8x36xbf16>
    %c0_2 = arith.constant 0 : index
    %c0_3 = arith.constant 0 : index
    %4 = vector.load %arg5[%c0_2, %c0_3] : memref<8x1xf32, #tpu.memory_space<vmem>>, vector<8x1xf32>
    %c0_4 = arith.constant 0 : index
    %c0_5 = arith.constant 0 : index
    %5 = vector.load %arg2[%c0_4, %c0_5] : memref<36x256xbf16, #tpu.memory_space<vmem>>, vector<36x256xbf16>
    %cst = arith.constant dense<0.000000e+00> : vector<8x256xf32>
    %6 = tpu.matmul %3, %5, %cst {dimension_numbers = #tpu.dot_dimension_numbers<[1], [0], [0], [1], [0, 0, 1, 1], [], []>} : vector<8x36xbf16>, vector<36x256xbf16>, vector<8x256xf32> -> vector<8x256xf32>
    %7 = vector.broadcast %4 : vector<8x1xf32> to vector<8x256xf32>
    %8 = arith.addf %6, %7 : vector<8x256xf32>
    %cst_6 = arith.constant 0.000000e+00 : f32
    %9 = vector.broadcast %cst_6 : f32 to vector<8x256xf32>
    %10 = arith.maximumf %8, %9 : vector<8x256xf32>
    %c0_7 = arith.constant 0 : index
    %c0_8 = arith.constant 0 : index
    %11 = vector.load %arg3[%c0_7, %c0_8] : memref<36x256xbf16, #tpu.memory_space<vmem>>, vector<36x256xbf16>
    %cst_9 = arith.constant dense<0.000000e+00> : vector<8x256xf32>
    %12 = tpu.matmul %3, %11, %cst_9 {dimension_numbers = #tpu.dot_dimension_numbers<[1], [0], [0], [1], [0, 0, 1, 1], [], []>} : vector<8x36xbf16>, vector<36x256xbf16>, vector<8x256xf32> -> vector<8x256xf32>
    %13 = vector.broadcast %4 : vector<8x1xf32> to vector<8x256xf32>
    %14 = arith.addf %12, %13 : vector<8x256xf32>
    %cst_10 = arith.constant 0.000000e+00 : f32
    %15 = vector.broadcast %cst_10 : f32 to vector<8x256xf32>
    %16 = arith.maximumf %14, %15 : vector<8x256xf32>
    %17 = arith.subf %10, %16 : vector<8x256xf32>
    %c0_11 = arith.constant 0 : index
    %c0_12 = arith.constant 0 : index
    %18 = vector.load %arg6[%c0_11, %c0_12] : memref<8x256xf32, #tpu.memory_space<vmem>>, vector<8x256xf32>
    %19 = arith.mulf %17, %17 : vector<8x256xf32>
    %20 = arith.addf %18, %19 : vector<8x256xf32>
    %c0_13 = arith.constant 0 : index
    %c0_14 = arith.constant 0 : index
    %21 = vector.load %arg6[%c0_13, %c0_14] : memref<8x256xf32, #tpu.memory_space<vmem>>, vector<8x256xf32>
    tpu.vector_store %arg6[%c0_13, %c0_14], %20 {strides = array<i32>} : memref<8x256xf32, #tpu.memory_space<vmem>>, vector<8x256xf32>,
    return
  }
  func.func @transform_0(%arg0: i32, %arg1: i32) -> (i32, i32) {
    %c1_i32 = arith.constant 1 : i32
    %0 = arith.muli %arg0, %c1_i32 : i32
    %1 = arith.addi %0, %arg1 : i32
    %c0_i32 = arith.constant 0 : i32
    %c0_i32_0 = arith.constant 0 : i32
    return %c0_i32, %1 : i32, i32
  }
  func.func @transform_1(%arg0: i32, %arg1: i32) -> (i32, i32) {
    %c1_i32 = arith.constant 1 : i32
    %0 = arith.muli %arg0, %c1_i32 : i32
    %1 = arith.addi %0, %arg1 : i32
    %c0_i32 = arith.constant 0 : i32
    %c0_i32_0 = arith.constant 0 : i32
    return %c0_i32, %1 : i32, i32
  }
  func.func @transform_2(%arg0: i32, %arg1: i32) -> (i32, i32) {
    %c0_i32 = arith.constant 0 : i32
    %c0_i32_0 = arith.constant 0 : i32
    %c0_i32_1 = arith.constant 0 : i32
    return %c0_i32, %c0_i32_0 : i32, i32
  }
  func.func @transform_3(%arg0: i32, %arg1: i32) -> (i32, i32) {
    %c0_i32 = arith.constant 0 : i32
    %c0_i32_0 = arith.constant 0 : i32
    %c0_i32_1 = arith.constant 0 : i32
    return %c0_i32, %c0_i32_0 : i32, i32
  }
  func.func @transform_4(%arg0: i32, %arg1: i32) -> (i32, i32) {
    %c0_i32 = arith.constant 0 : i32
    %c0_i32_0 = arith.constant 0 : i32
    return %arg0, %c0_i32 : i32, i32
  }
}

</mosaic_0001>

<llo_original>
// kernel: tpu_custom_call.1
$region0: #{tpu_custom_call.1}
  #allocation0 [shape = 'u32[]', space=smem, size = 0x4, offset = 0x4, fixed_abs, tag = 'smem constant byte address 0x4 - core index']
  #allocation1 [shape = 'u32[144,128]{1,0:T(1,128)}', space=vmem, size = 0x12000, scoped, tag = 'internal scratch']
  %s0 = inlined_call_operand.hbm [shape: bf16[36,512], index: 0, kind: input, shape index: {}]
  %s1 = inlined_call_operand.hbm [shape: bf16[36,512], index: 1, kind: input, shape index: {}]
  %s2 = inlined_call_operand.vmem [shape: bf16[8,36], index: 2, kind: input, shape index: {}]
  %s3 = inlined_call_operand.vmem [shape: f32[8,1], index: 3, kind: input, shape index: {}]
  %s4 = inlined_call_operand.hbm [shape: f32[16,256], index: 4, kind: output, shape index: {}]
  %s5 = sld [smem:[#allocation0]]
  $region61: #{tpu_custom_call.1} parent=0
    _
  %s7 = ssub.s32 1, %s5
  %s8 = scalar_select 0, %s7, %s5
  $region1: #{tpu_custom_call.1} parent=0
    #allocation2 [shape = 'u8[40960]{0}', space=vmem, size = 0xa000, scoped, tag = 'input window, operand 0']
    #allocation3 [shape = 's32[2]{0}', space=sflag, size = 0x8, scoped, tag = 'scoped memory for tpu_custom_call.1']
    #allocation4 [shape = 's32[2]{0}', space=sflag, size = 0x8, scoped, tag = 'scoped memory for tpu_custom_call.1']
    #allocation5 [shape = 'u8[40960]{0}', space=vmem, size = 0xa000, scoped, tag = 'input window, operand 1']
    #allocation6 [shape = 's32[2]{0}', space=sflag, size = 0x8, scoped, tag = 'scoped memory for tpu_custom_call.1']
    #allocation7 [shape = 'u8[16384]{0}', space=vmem, size = 0x4000, scoped, tag = 'output window, operand 0']
    %9 = vsyncpa [#allocation3], 0
    %s10 = scalar_lea.sflag [#allocation3], 1
    %11 = vsyncpa %s10, 0
    %12 = vsyncpa [#allocation6], 0
    %s13 = scalar_lea.sflag [#allocation6], 1
    %14 = vsyncpa %s13, 0
    %15 = vsyncpa [#allocation4], 0
    %s16 = scalar_lea.sflag [#allocation4], 1
    %17 = vsyncpa %s16, 0
    loop: start=0, step=1, limit=4
    $region2: #{tpu_custom_call.1} parent=1 // loop_pre_header
      _
    $region3: #{tpu_custom_call.1} parent=1 // loop_header
      %s19 = sphi 0, %s23
      %p20 = scmp.ge.s32.totalorder %s19, 4
      %s26 = sphi 0, %s38
      %s27 = sphi 0, %s34
      %s28 = sphi 0, %s26
      %s29 = sphi 0, %s27
      %s30 = sphi 0, %s28
      %s31 = sphi 0, %s29
      %s43 = sphi 0, %s45
      %s46 = sphi 0, %s43
      %s47 = sphi 0, %s46
      %s63 = sphi 0, %s47
      %s71 = sphi 0, %s73
      %s74 = sphi 0, %s71
      %s75 = sphi 0, %s74
      %s91 = sphi 0, %s75
      %s95 = sphi 0, %s95
      %s97 = sphi 0, %s95
      %s98 = sphi 0, %s97
      %s112 = sphi 0, %s98
      %s116 = sphi 0, %s116
      %s118 = sphi 0, %s116
      %s119 = sphi 0, %s118
      %s133 = sphi 0, %s119
      %s139 = sphi 0, %s141
      %s142 = sphi 0, %s139
      %s143 = sphi 0, %s142
      %s159 = sphi 0, %s143
    $region4: #{tpu_custom_call.1} parent=1 // loop_header_branch
      %22 = sbr.rel (%p20) target = $region8
    $region5: #{tpu_custom_call.1} parent=1 // loop_body
      %s24 = ssub.s32 %s19, 1
      %s25 = ssub.s32 %s19, 2
      %s32 = sadd.s32 1, %s27
      %p33 = scmp.ge.s32.totalorder %s32, 1
      %s34 = scalar_select %p33, 0, %s32
      %s35 = sadd.s32 1, %s26
      %s36 = scalar_select %p33, %s35, %s26
      %p37 = scmp.ge.s32.totalorder %s36, 2
      %s38 = scalar_select %p37, 0, %s36
      %s39 = sadd.s32 %s26, %s27
      %s40 = sadd.s32 %s38, %s34
      %s41 = ssub.s32 %s39, %s40
      %p42 = scmp.eq.s32.totalorder %s41, 0
      %s44 = sadd.s32 %s43, 1
      %s45 = scalar_select %p42, %s43, %s44
      %p48 = pneg %p42
      %p49 = scmp.eq.s32.totalorder %s19, 1
      %p50 = por %p48, %p49
      %p51 = scmp.ne.s32.totalorder %s43, %s46
      %p52 = scmp.eq.s32.totalorder %s19, 0
      %p53 = por %p51, %p52
      %p54 = scmp.ne.s32.totalorder %s43, %s46
      %p55 = scmp.eq.s32.totalorder %s24, 1
      %p56 = por %p54, %p55
      %p57 = scmp.ne.s32.totalorder %s46, %s47
      %p58 = scmp.eq.s32.totalorder %s24, 0
      %p59 = por %p57, %p58
      %p60 = scmp.ne.s32.totalorder %s46, %s47
      %p61 = scmp.eq.s32.totalorder %s25, 1
      %p62 = por %p60, %p61
      %p64 = scmp.ne.s32.totalorder %s47, %s63
      %p65 = scmp.eq.s32.totalorder %s25, 0
      %p66 = por %p64, %p65
      %s67 = sadd.s32 %s26, %s27
      %s68 = sadd.s32 %s38, %s34
      %s69 = ssub.s32 %s67, %s68
      %p70 = scmp.eq.s32.totalorder %s69, 0
      %s72 = sadd.s32 %s71, 1
      %s73 = scalar_select %p70, %s71, %s72
      %p76 = pneg %p70
      %p77 = scmp.eq.s32.totalorder %s19, 1
      %p78 = por %p76, %p77
      %p79 = scmp.ne.s32.totalorder %s71, %s74
      %p80 = scmp.eq.s32.totalorder %s19, 0
      %p81 = por %p79, %p80
      %p82 = scmp.ne.s32.totalorder %s71, %s74
      %p83 = scmp.eq.s32.totalorder %s24, 1
      %p84 = por %p82, %p83
      %p85 = scmp.ne.s32.totalorder %s74, %s75
      %p86 = scmp.eq.s32.totalorder %s24, 0
      %p87 = por %p85, %p86
      %p88 = scmp.ne.s32.totalorder %s74, %s75
      %p89 = scmp.eq.s32.totalorder %s25, 1
      %p90 = por %p88, %p89
      %p92 = scmp.ne.s32.totalorder %s75, %s91
      %p93 = scmp.eq.s32.totalorder %s25, 0
      %p94 = por %p92, %p93
      %s96 = sadd.s32 %s95, 1
      %p99 = scmp.eq.s32.totalorder %s19, 1
      %p100 = scmp.ne.s32.totalorder %s95, %s97
      %p101 = scmp.eq.s32.totalorder %s19, 0
      %p102 = por %p100, %p101
      %p103 = scmp.ne.s32.totalorder %s95, %s97
      %p104 = scmp.eq.s32.totalorder %s24, 1
      %p105 = por %p103, %p104
      %p106 = scmp.ne.s32.totalorder %s97, %s98
      %p107 = scmp.eq.s32.totalorder %s24, 0
      %p108 = por %p106, %p107
      %p109 = scmp.ne.s32.totalorder %s97, %s98
      %p110 = scmp.eq.s32.totalorder %s25, 1
      %p111 = por %p109, %p110
      %p113 = scmp.ne.s32.totalorder %s98, %s112
      %p114 = scmp.eq.s32.totalorder %s25, 0
      %p115 = por %p113, %p114
      %s117 = sadd.s32 %s116, 1
      %p120 = scmp.eq.s32.totalorder %s19, 1
      %p121 = scmp.ne.s32.totalorder %s116, %s118
      %p122 = scmp.eq.s32.totalorder %s19, 0
      %p123 = por %p121, %p122
      %p124 = scmp.ne.s32.totalorder %s116, %s118
      %p125 = scmp.eq.s32.totalorder %s24, 1
      %p126 = por %p124, %p125
      %p127 = scmp.ne.s32.totalorder %s118, %s119
      %p128 = scmp.eq.s32.totalorder %s24, 0
      %p129 = por %p127, %p128
      %p130 = scmp.ne.s32.totalorder %s118, %s119
      %p131 = scmp.eq.s32.totalorder %s25, 1
      %p132 = por %p130, %p131
      %p134 = scmp.ne.s32.totalorder %s119, %s133
      %p135 = scmp.eq.s32.totalorder %s25, 0
      %p136 = por %p134, %p135
      %s137 = ssub.s32 %s26, %s38
      %p138 = scmp.eq.s32.totalorder %s137, 0
      %s140 = sadd.s32 %s139, 1
      %s141 = scalar_select %p138, %s139, %s140
      %p144 = pneg %p138
      %p145 = scmp.eq.s32.totalorder %s19, 1
      %p146 = por %p144, %p145
      %p147 = scmp.ne.s32.totalorder %s139, %s142
      %p148 = scmp.eq.s32.totalorder %s19, 0
      %p149 = por %p147, %p148
      %p150 = scmp.ne.s32.totalorder %s139, %s142
      %p151 = scmp.eq.s32.totalorder %s24, 1
      %p152 = por %p150, %p151
      %p153 = scmp.ne.s32.totalorder %s142, %s143
      %p154 = scmp.eq.s32.totalorder %s24, 0
      %p155 = por %p153, %p154
      %p156 = scmp.ne.s32.totalorder %s142, %s143
      %p157 = scmp.eq.s32.totalorder %s25, 1
      %p158 = por %p156, %p157
      %p160 = scmp.ne.s32.totalorder %s143, %s159
      %p161 = scmp.eq.s32.totalorder %s25, 0
      %p162 = por %p160, %p161
      %p163 = scmp.le.s32.totalorder 1, %s19
      %p164 = scmp.lt.s32.totalorder %s19, 3
      %p165 = pnand %p163, %p164
      %p166 = pneg %p165
      // Predicated region
      $region9: #{tpu_custom_call.1} parent=5 // pred_check
        _
      $region10: #{tpu_custom_call.1} parent=5 // pred_check_branch
        %168 = sbr.rel (%p165) target = $region12
      $region11: #{tpu_custom_call.1} parent=5 // pred_region
        %s169 = ssub.s32 %s19, 1
        // Predicated region
        $region13: #{tpu_custom_call.1} parent=11 // pred_check
          %p170 = pneg %p108
        $region14: #{tpu_custom_call.1} parent=11 // pred_check_branch
          %172 = sbr.rel (%p170) target = $region16
        $region15: #{tpu_custom_call.1} parent=11 // pred_region
          _
        $region16: #{tpu_custom_call.1} parent=11 // pred_fallthru
          _
        // Predicated region
        $region17: #{tpu_custom_call.1} parent=11 // pred_check
          %p173 = pneg %p129
        $region18: #{tpu_custom_call.1} parent=11 // pred_check_branch
          %175 = sbr.rel (%p173) target = $region20
        $region19: #{tpu_custom_call.1} parent=11 // pred_region
          _
        $region20: #{tpu_custom_call.1} parent=11 // pred_fallthru
          _
      $region12: #{tpu_custom_call.1} parent=5 // pred_fallthru
        _
      %p176 = scmp.lt.s32.totalorder %s19, 2
      // Predicated region
      $region21: #{tpu_custom_call.1} parent=5 // pred_check
        %p177 = pneg %p176
      $region22: #{tpu_custom_call.1} parent=5 // pred_check_branch
        %179 = sbr.rel (%p177) target = $region24
      $region23: #{tpu_custom_call.1} parent=5 // pred_region
        // Predicated region
        $region25: #{tpu_custom_call.1} parent=23 // pred_check
          %p180 = pneg %p53
        $region26: #{tpu_custom_call.1} parent=23 // pred_check_branch
          %182 = sbr.rel (%p180) target = $region28
        $region27: #{tpu_custom_call.1} parent=23 // pred_region
          %s183 = sand.u32 %s43, 1
          %s184 = scalar_lea.sflag [#allocation3], %s183
          %s185 = sand.u32 %s43, 1
          %s186 = smul.addr %s185, 40
          %s187 = scalar_lea.vmem [#allocation2], %s186
          %s188 = sadd.s32 %s26, %s27
          %s189 = smul.u32 2, %s188
          %s191 = ssub.s32 640, 640
          %192 = vsyncadd %s184, %s191
          %s193 = smul.addr %s189, 64
          %s194 = scalar_lea.hbm %s0, %s193
          %s195 = sshll.u32 %s187, 4
          %s196 = int_to_ptr.vmem [resolvable:$true] %s195
          %201 = dma.hbm_to_vmem [thread:$0]  %s194, 640, %s196, %s184, 256, 128, 8
        $region28: #{tpu_custom_call.1} parent=23 // pred_fallthru
          _
        // Predicated region
        $region29: #{tpu_custom_call.1} parent=23 // pred_check
          %p202 = pneg %p81
        $region30: #{tpu_custom_call.1} parent=23 // pred_check_branch
          %204 = sbr.rel (%p202) target = $region32
        $region31: #{tpu_custom_call.1} parent=23 // pred_region
          %s205 = sand.u32 %s71, 1
          %s206 = scalar_lea.sflag [#allocation6], %s205
          %s207 = sand.u32 %s71, 1
          %s208 = smul.addr %s207, 40
          %s209 = scalar_lea.vmem [#allocation5], %s208
          %s210 = sadd.s32 %s26, %s27
          %s211 = smul.u32 2, %s210
          %s213 = ssub.s32 640, 640
          %214 = vsyncadd %s206, %s213
          %s215 = smul.addr %s211, 64
          %s216 = scalar_lea.hbm %s1, %s215
          %s217 = sshll.u32 %s209, 4
          %s218 = int_to_ptr.vmem [resolvable:$true] %s217
          %223 = dma.hbm_to_vmem [thread:$0]  %s216, 640, %s218, %s206, 256, 128, 8
        $region32: #{tpu_custom_call.1} parent=23 // pred_fallthru
          _
      $region24: #{tpu_custom_call.1} parent=5 // pred_fallthru
        _
      %p224 = scmp.le.s32.totalorder 1, %s19
      %p225 = scmp.lt.s32.totalorder %s19, 3
      %p226 = pnand %p224, %p225
      %p227 = pneg %p226
      // Predicated region
      $region33: #{tpu_custom_call.1} parent=5 // pred_check
        _
      $region34: #{tpu_custom_call.1} parent=5 // pred_check_branch
        %229 = sbr.rel (%p226) target = $region36
      $region35: #{tpu_custom_call.1} parent=5 // pred_region
        %s230 = ssub.s32 %s19, 1
        %s231 = sand.u32 %s46, 1
        %s232 = scalar_lea.sflag [#allocation3], %s231
        %s233 = sand.u32 %s46, 1
        %s234 = smul.addr %s233, 40
        %s235 = scalar_lea.vmem [#allocation2], %s234
        // Predicated region
        $region37: #{tpu_custom_call.1} parent=35 // pred_check
          %p236 = pneg %p59
        $region38: #{tpu_custom_call.1} parent=35 // pred_check_branch
          %238 = sbr.rel (%p236) target = $region40
        $region39: #{tpu_custom_call.1} parent=35 // pred_region
          %239 = dma.done %s232, 640
        $region40: #{tpu_custom_call.1} parent=35 // pred_fallthru
          _
        %s240 = sand.u32 %s74, 1
        %s241 = scalar_lea.sflag [#allocation6], %s240
        %s242 = sand.u32 %s74, 1
        %s243 = smul.addr %s242, 40
        %s244 = scalar_lea.vmem [#allocation5], %s243
        // Predicated region
        $region41: #{tpu_custom_call.1} parent=35 // pred_check
          %p245 = pneg %p87
        $region42: #{tpu_custom_call.1} parent=35 // pred_check_branch
          %247 = sbr.rel (%p245) target = $region44
        $region43: #{tpu_custom_call.1} parent=35 // pred_region
          %248 = dma.done %s241, 640
        $region44: #{tpu_custom_call.1} parent=35 // pred_fallthru
          _
        %s249 = sand.u32 %s46, 1
        %s250 = scalar_lea.sflag [#allocation3], %s249
        %s251 = sand.u32 %s46, 1
        %s252 = smul.addr %s251, 40
        %s253 = scalar_lea.vmem [#allocation2], %s252
        %p254 = pneg %p59
        %p255 = pneg %p56
        %s256 = sand.u32 %s74, 1
        %s257 = scalar_lea.sflag [#allocation6], %s256
        %s258 = sand.u32 %s74, 1
        %s259 = smul.addr %s258, 40
        %s260 = scalar_lea.vmem [#allocation5], %s259
        %p261 = pneg %p87
        %p262 = pneg %p84
        %p263 = pneg %p108
        %p264 = pneg %p105
        %p265 = pneg %p129
        %p266 = pneg %p126
        %p267 = pneg %p155
        %p268 = pneg %p152
        %s269 = sand.u32 %s142, 1
        %s270 = scalar_lea.sflag [#allocation4], %s269
        %s271 = sand.u32 %s142, 1
        %s272 = smul.addr %s271, 16
        %s273 = scalar_lea.vmem [#allocation7], %s272
        %s274 = sadd.s32 %s28, %s29
        %s275 = smul.u32 2, %s274
        %s276 = sadd.s32 %s28, %s29
        %s277 = smul.u32 2, %s276
        %p279 = scmp.eq.s32.totalorder %s29, 0
        // Predicated region
        $region45: #{tpu_custom_call.1} parent=35 // pred_check
          %p280 = pneg %p279
        $region46: #{tpu_custom_call.1} parent=35 // pred_check_branch
          %282 = sbr.rel (%p280) target = $region48
        $region47: #{tpu_custom_call.1} parent=35 // pred_region
          %283 = vst [vmem:[%s273] sm:$0xff] 0.0
          %284 = vst [vmem:[%s273 + $0x8] sm:$0xff] 0.0
        $region48: #{tpu_custom_call.1} parent=35 // pred_fallthru
          _
        %v285 = vld [vmem:[%s2] sm:$0xf]
        %v286 = vld [vmem:[%s3] sm:$0xff]
        %v287 = vld [vmem:[%s235] sm:$0xff]
        %v288 = vld [vmem:[%s235 + $0x8] sm:$0xff]
        %v289 = vld [vmem:[%s235 + $0x10] sm:$0xff]
        %v290 = vld [vmem:[%s235 + $0x18] sm:$0xff]
        %v291 = vld [vmem:[%s235 + $0x20] sm:$0x33]
        %293 = vset.pattern.permute.xlu0 0
        %294 = vperm.xlu0 %293, %v286
        %v295 = vpop.permute.xlu0 %294
        %v302 = vunpack.c.l.b16 %v287
        %v303 = vunpack.c.h.b16 %v287
        %v304 = vunpack.c.l.b16 %v288
        %v305 = vunpack.c.h.b16 %v288
        %v306 = vunpack.c.l.b16 %v289
        %v307 = vunpack.c.h.b16 %v289
        %v308 = vunpack.c.l.b16 %v290
        %v309 = vunpack.c.h.b16 %v290
        %v310 = vunpack.c.l.b16 %v291
        %v311 = vunpack.c.h.b16 %v291
        %v312 = vpack.c.b16 %v304, %v302
        %v313 = vpack.c.b16 %v305, %v303
        %v314 = vpack.c.b16 %v308, %v306
        %v315 = vpack.c.b16 %v309, %v307
        %v316 = vpack.c.b16 %v310, %v310
        %v317 = vpack.c.b16 %v311, %v311
        %vm322 = vcmask 293888
        %v324 = vsel %vm322, %v285, 0
        %vm326 = vcmask 1041408
        %v328 = vsel %vm326, %v316, 0
        %v331 = vsel %vm326, %v317, 0
        %333 = vmatprep.subr.bf16.mxu0 %v313
        %334 = vmatpush1.bf16.msra.mxu0 %v312
        %335 = vmatprep.subr.bf16.mxu0 %v315
        %336 = vmatpush1.bf16.msra.mxu0 %v314
        %337 = vmatprep.subr.bf16.mxu0 %v331
        %338 = vmatpush1.bf16.msra.mxu0 %v328
        %339 = vmatprep.subr.bf16.mxu0 0
        %340 = vmatpush1.bf16.msra.mxu0 0
        %341 = vmatprep.subr.bf16.mxu0 0
        %342 = vmatpush1.bf16.msra.mxu0 0
        %343 = vmatprep.subr.bf16.mxu0 0
        %344 = vmatpush1.bf16.msra.mxu0 0
        %345 = vmatprep.subr.bf16.mxu0 0
        %346 = vmatpush1.bf16.msra.mxu0 0
        %347 = vmatprep.subr.bf16.mxu0 0
        %348 = vmatpush1.bf16.msra.mxu0 0
        %349 = vmatprep.subr.bf16.mxu0 0
        %350 = vmatpush1.bf16.msra.mxu0 0
        %351 = vmatprep.subr.bf16.mxu0 0
        %352 = vmatpush1.bf16.msra.mxu0 0
        %353 = vmatprep.subr.bf16.mxu0 0
        %354 = vmatpush1.bf16.msra.mxu0 0
        %355 = vmatprep.subr.bf16.mxu0 0
        %356 = vmatpush1.bf16.msra.mxu0 0
        %357 = vmatprep.subr.bf16.mxu0 0
        %358 = vmatpush1.bf16.msra.mxu0 0
        %359 = vmatprep.subr.bf16.mxu0 0
        %360 = vmatpush1.bf16.msra.mxu0 0
        %361 = vmatprep.subr.bf16.mxu0 0
        %362 = vmatpush1.bf16.msra.mxu0 0
        %363 = vmatprep.subr.bf16.mxu0 0
        %364 = vmatpush1.bf16.msra.mxu0 0
        %365 = vmatprep.mubr.bf16.mxu0 0
        %366 = vmatmul.mubr.bf16.gmra.mrb[0].mxu0 %v324
        %v367 = vpop.f32.mrb[0].mxu0
        %v368 = vadd.f32 %v295, %v367
        %v369 = vpop.f32.mrb[0].mxu0
        %v370 = vadd.f32 %v295, %v369
        %v371 = vpop.f32.mrb[0].mxu0
        %v372 = vpop.f32.mrb[0].mxu0
        %373 = vdwg.mxu0
        %v374 = vmax.f32 %v368, 0.0
        %v375 = vmax.f32 %v370, 0.0
        %v376 = vld [vmem:[%s244] sm:$0xff]
        %v377 = vld [vmem:[%s244 + $0x8] sm:$0xff]
        %v378 = vld [vmem:[%s244 + $0x10] sm:$0xff]
        %v379 = vld [vmem:[%s244 + $0x18] sm:$0xff]
        %v380 = vld [vmem:[%s244 + $0x20] sm:$0x33]
        %v386 = vunpack.c.l.b16 %v376
        %v387 = vunpack.c.h.b16 %v376
        %v388 = vunpack.c.l.b16 %v377
        %v389 = vunpack.c.h.b16 %v377
        %v390 = vunpack.c.l.b16 %v378
        %v391 = vunpack.c.h.b16 %v378
        %v392 = vunpack.c.l.b16 %v379
        %v393 = vunpack.c.h.b16 %v379
        %v394 = vunpack.c.l.b16 %v380
        %v395 = vunpack.c.h.b16 %v380
        %v396 = vpack.c.b16 %v388, %v386
        %v397 = vpack.c.b16 %v389, %v387
        %v398 = vpack.c.b16 %v392, %v390
        %v399 = vpack.c.b16 %v393, %v391
        %v400 = vpack.c.b16 %v394, %v394
        %v401 = vpack.c.b16 %v395, %v395
        %v407 = vsel %vm326, %v400, 0
        %v410 = vsel %vm326, %v401, 0
        %412 = vmatprep.subr.bf16.mxu0 %v397
        %413 = vmatpush1.bf16.msra.mxu0 %v396
        %414 = vmatprep.subr.bf16.mxu0 %v399
        %415 = vmatpush1.bf16.msra.mxu0 %v398
        %416 = vmatprep.subr.bf16.mxu0 %v410
        %417 = vmatpush1.bf16.msra.mxu0 %v407
        %418 = vmatprep.subr.bf16.mxu0 0
        %419 = vmatpush1.bf16.msra.mxu0 0
        %420 = vmatprep.subr.bf16.mxu0 0
        %421 = vmatpush1.bf16.msra.mxu0 0
        %422 = vmatprep.subr.bf16.mxu0 0
        %423 = vmatpush1.bf16.msra.mxu0 0
        %424 = vmatprep.subr.bf16.mxu0 0
        %425 = vmatpush1.bf16.msra.mxu0 0
        %426 = vmatprep.subr.bf16.mxu0 0
        %427 = vmatpush1.bf16.msra.mxu0 0
        %428 = vmatprep.subr.bf16.mxu0 0
        %429 = vmatpush1.bf16.msra.mxu0 0
        %430 = vmatprep.subr.bf16.mxu0 0
        %431 = vmatpush1.bf16.msra.mxu0 0
        %432 = vmatprep.subr.bf16.mxu0 0
        %433 = vmatpush1.bf16.msra.mxu0 0
        %434 = vmatprep.subr.bf16.mxu0 0
        %435 = vmatpush1.bf16.msra.mxu0 0
        %436 = vmatprep.subr.bf16.mxu0 0
        %437 = vmatpush1.bf16.msra.mxu0 0
        %438 = vmatprep.subr.bf16.mxu0 0
        %439 = vmatpush1.bf16.msra.mxu0 0
        %440 = vmatprep.subr.bf16.mxu0 0
        %441 = vmatpush1.bf16.msra.mxu0 0
        %442 = vmatprep.subr.bf16.mxu0 0
        %443 = vmatpush1.bf16.msra.mxu0 0
        %444 = vmatprep.mubr.bf16.mxu0 0
        %445 = vmatmul.mubr.bf16.gmra.mrb[0].mxu0 %v324
        %v446 = vpop.f32.mrb[0].mxu0
        %v447 = vadd.f32 %v295, %v446
        %v448 = vpop.f32.mrb[0].mxu0
        %v449 = vadd.f32 %v295, %v448
        %v450 = vpop.f32.mrb[0].mxu0
        %v451 = vpop.f32.mrb[0].mxu0
        %452 = vdwg.mxu0
        %v453 = vmax.f32 %v447, 0.0
        %v454 = vmax.f32 %v449, 0.0
        %v455 = vsub.f32 %v374, %v453
        %v456 = vsub.f32 %v375, %v454
        %v457 = vld [vmem:[%s273] sm:$0xff]
        %v458 = vld [vmem:[%s273 + $0x8] sm:$0xff]
        %v459 = vmul.f32 %v455, %v455
        %v460 = vmul.f32 %v456, %v456
        %v461 = vadd.f32 %v457, %v459
        %v462 = vadd.f32 %v458, %v460
        %463 = vst [vmem:[%s273] sm:$0xff] %v461
        %464 = vst [vmem:[%s273 + $0x8] sm:$0xff] %v462
        %s465 = sand.u32 %s142, 1
        %s466 = scalar_lea.sflag [#allocation4], %s465
        %s467 = sand.u32 %s142, 1
        %s468 = smul.addr %s467, 16
        %s469 = scalar_lea.vmem [#allocation7], %s468
        // Predicated region
        $region49: #{tpu_custom_call.1} parent=35 // pred_check
          %p470 = pneg %p152
        $region50: #{tpu_custom_call.1} parent=35 // pred_check_branch
          %472 = sbr.rel (%p470) target = $region52
        $region51: #{tpu_custom_call.1} parent=35 // pred_region
          %s474 = ssub.s32 256, 256
          %475 = vsyncadd %s466, %s474
          %s476 = smul.addr %s28, 2
          %s477 = smul.addr %s476, 128
          %s478 = scalar_lea.hbm %s4, %s477
          %s480 = sshll.u32 %s469, 4
          %s481 = int_to_ptr.vmem [resolvable:$true] %s480
          %483 = dma.vmem_to_hbm [thread:$0]  %s481, 256, %s478, %s466
        $region52: #{tpu_custom_call.1} parent=35 // pred_fallthru
          _
      $region36: #{tpu_custom_call.1} parent=5 // pred_fallthru
        _
      %p484 = scmp.le.s32.totalorder 2, %s19
      // Predicated region
      $region53: #{tpu_custom_call.1} parent=5 // pred_check
        %p485 = pneg %p484
      $region54: #{tpu_custom_call.1} parent=5 // pred_check_branch
        %487 = sbr.rel (%p485) target = $region56
      $region55: #{tpu_custom_call.1} parent=5 // pred_region
        %s488 = ssub.s32 %s19, 2
        // Predicated region
        $region57: #{tpu_custom_call.1} parent=55 // pred_check
          %p489 = pneg %p158
        $region58: #{tpu_custom_call.1} parent=55 // pred_check_branch
          %491 = sbr.rel (%p489) target = $region60
        $region59: #{tpu_custom_call.1} parent=55 // pred_region
          %s492 = sand.u32 %s143, 1
          %s493 = scalar_lea.sflag [#allocation4], %s492
          %s494 = sand.u32 %s143, 1
          %s495 = smul.addr %s494, 16
          %s496 = scalar_lea.vmem [#allocation7], %s495
          %497 = dma.done %s493, 256
        $region60: #{tpu_custom_call.1} parent=55 // pred_fallthru
          _
      $region56: #{tpu_custom_call.1} parent=5 // pred_fallthru
        _
    $region6: #{tpu_custom_call.1} parent=1 // loop_footer
      %s23 = sadd.s32 1, %s19
    $region7: #{tpu_custom_call.1} parent=1 // loop_footer_branch
      %18 = sbr.rel target = $region3
    $region8: #{tpu_custom_call.1} parent=1 // loop_exit
      _
    %498 = vsyncpa [#allocation3], 1
    %s499 = scalar_lea.sflag [#allocation3], 1
    %500 = vsyncpa %s499, 1
    %501 = vsyncpa [#allocation6], 1
    %s502 = scalar_lea.sflag [#allocation6], 1
    %503 = vsyncpa %s502, 1
    %504 = vsyncpa [#allocation4], 1
    %s505 = scalar_lea.sflag [#allocation4], 1
    %506 = vsyncpa %s505, 1

</llo_original>
